<compile_context>
chip_gen: v6e
topology: v6e:2x2x1
jax: 0.10.0
libtpu: 0.0.40
codegen_flags: <defaults>
</compile_context>

<pallas_src>
import jax
import jax.numpy as jnp
from jax import lax
from jax.experimental import pallas as pl
from jax.experimental.pallas import tpu as pltpu


_INV_SQRT2 = 0.7071067811865476


def _vol_head_kernel(x_ref, w1t_ref, b1_ref, w2t_ref, b2_ref, o_ref):
    # x_ref:   (TM, E)    token tile (tokens on sublanes, embed on lanes)
    # w1t_ref: (H, E)     W1 transposed, VMEM-resident across the grid
    # b1_ref:  (H, 1)     f32, resident
    # w2t_ref: (1, H)     f32, 0.5*W2 pre-folded, resident
    # b2_ref:  (1,)       scalar in SMEM
    # o_ref:   (1, 1, TM) lane-dense output tile
    x = x_ref[...]

    # Linear 1, transposed on the MXU: h[H, TM] = W1^T @ x^T
    # (contract both operands on their last dim; tokens land on the lane axis).
    h = jnp.einsum("he,me->hm", w1t_ref[...], x,
                   preferred_element_type=jnp.float32)
    h = h + b1_ref[...]                              # (H, 1) lane-broadcast

    # Exact (erf) GELU; the 0.5 factor is folded into w2t in the wrapper.
    g = h * (1.0 + lax.erf(h * _INV_SQRT2))

    # Linear 2 (out_features = 1) on the MXU: (1, H) @ (H, TM) -> (1, TM),
    # naturally lane-dense (one value per token lane).
    y = jnp.dot(w2t_ref[...], g, preferred_element_type=jnp.float32) + b2_ref[0]

    # Softplus (beta=1, threshold=20), matching torch.nn.Softplus().
    sp = jnp.where(y > 20.0, y, jnp.log1p(jnp.exp(jnp.minimum(y, 20.0))))

    o_ref[0] = sp.astype(o_ref.dtype)


def _round_up(n, m):
    return ((n + m - 1) // m) * m


def _device_kind():
    try:
        return jax.devices()[0].device_kind.lower()
    except Exception:
        return ""


def _choose_tile(M, tile_m):
    """Row-tile size per TPU generation (see perf review)."""
    is_v7 = "v7" in _device_kind()
    if tile_m is None:
        if is_v7:
            # 64 MiB VMEM: cap the tile, and force >= 2 tiles whenever M allows
            # so the "parallel" axis shards across both TensorCores.
            tile_m = 512
            if M > 8:
                tile_m = min(tile_m, _round_up((M + 1) // 2, 8))
        else:
            # v5e / v6e: 128 MiB physical VMEM -> big tiles amortize the
            # ~0.35us per-grid-step overhead and enlarge each x DMA.
            tile_m = 1024
    tile = max(8, min(_round_up(tile_m, 8), _round_up(M, 8)))
    return tile, is_v7


def prepare_vol_head_params(w1, b1, w2, b2, *, compute_dtype=jnp.float32):
    """One-time weight preparation, hoisted out of the per-call path.

    w1: (E, H), b1: (H,), w2: (H, 1), b2: (1,).
    compute_dtype controls what is fed to the MXU for Linear_1 (bf16 halves the
    HBM read traffic); bias, GELU and softplus always run in f32.
    """
    E, H = w1.shape
    return {
        "w1t": jnp.asarray(w1, jnp.float32).T.astype(compute_dtype),   # (H, E)
        "b1": jnp.asarray(b1, jnp.float32).reshape(H, 1),              # (H, 1)
        "w2t": (0.5 * jnp.asarray(w2, jnp.float32)).reshape(1, H),     # (1, H), GELU 0.5 folded in
        "b2": jnp.asarray(b2, jnp.float32).reshape(1),                 # SMEM scalar
    }


def vol_surface_head(x, params, *, tile_m=None):
    """x: (B, S, E) -> (B, S) f32.  params from prepare_vol_head_params()."""
    B, S, E = x.shape
    w1t, b1c, w2t, b2s = params["w1t"], params["b1"], params["w2t"], params["b2"]
    H = w1t.shape[0]
    M = B * S

    # Ideally the upstream producer already emits x in the compute dtype; this
    # is a no-op on the default f32 path.
    x2d = x.reshape(M, E).astype(w1t.dtype)

    tile, is_v7 = _choose_tile(M, tile_m)
    num_tiles = pl.cdiv(M, tile)   # ragged tail handled by the pipeline, no jnp.pad

    # Explicit scoped-VMEM budget: double-buffered x/out tiles + resident
    # weights + f32 (H, tile) GELU temporaries, with headroom.
    xb = jnp.dtype(x2d.dtype).itemsize
    wb = jnp.dtype(w1t.dtype).itemsize
    est = (2 * tile * E * xb                 # x double buffer
           + 2 * tile * 4                    # out double buffer
           + 2 * (H * E * wb + 2 * H * 4)    # resident weights (double-buffered)
           + 8 * H * tile * 4)               # in-kernel f32 temporaries
    vmem_cap = (48 << 20) if is_v7 else (96 << 20)
    vmem_limit = int(min(max(2 * est, 32 << 20), vmem_cap))

    out = pl.pallas_call(
        _vol_head_kernel,
        out_shape=jax.ShapeDtypeStruct((num_tiles, 1, tile), jnp.float32),
        grid_spec=pltpu.PrefetchScalarGridSpec(
            num_scalar_prefetch=0,
            grid=(num_tiles,),
            in_specs=[
                pl.BlockSpec((tile, E), lambda i: (i, 0)),          # x tile
                pl.BlockSpec((H, E), lambda i: (0, 0)),             # W1^T (resident)
                pl.BlockSpec((H, 1), lambda i: (0, 0)),             # b1   (resident)
                pl.BlockSpec((1, H), lambda i: (0, 0)),             # 0.5*W2^T (resident)
                pl.BlockSpec(memory_space=pltpu.MemorySpace.SMEM),  # b2 scalar
            ],
            out_specs=pl.BlockSpec((1, 1, tile), lambda i: (i, 0, 0)),
        ),
        compiler_params=pltpu.CompilerParams(
            dimension_semantics=("parallel",),   # shard row tiles across TCs (v7x)
            vmem_limit_bytes=vmem_limit,
        ),
    )(x2d, w1t, b1c, w2t, b2s)

    # Garbage lanes from the partial tail tile are dropped here.
    return out.reshape(num_tiles * tile)[:M].reshape(B, S)


def _reference(x, w1, b1, w2, b2):
    h = x @ w1 + b1
    h = 0.5 * h * (1.0 + lax.erf(h * _INV_SQRT2))
    y = jnp.sum(h * w2[:, 0], axis=-1) + b2[0]
    return jnp.where(y > 20.0, y, jnp.log1p(jnp.exp(jnp.minimum(y, 20.0))))


def _init_params(key, embed_dim, hidden_dim):
    # Deterministic PyTorch-style init: U(-1/sqrt(fan_in), 1/sqrt(fan_in)).
    k1, k2, k3, k4 = jax.random.split(key, 4)
    bound1 = 1.0 / jnp.sqrt(embed_dim)
    bound2 = 1.0 / jnp.sqrt(hidden_dim)
    w1 = jax.random.uniform(k1, (embed_dim, hidden_dim), jnp.float32, -bound1, bound1)
    b1 = jax.random.uniform(k2, (hidden_dim,), jnp.float32, -bound1, bound1)
    w2 = jax.random.uniform(k3, (hidden_dim, 1), jnp.float32, -bound2, bound2)
    b2 = jax.random.uniform(k4, (1,), jnp.float32, -bound2, bound2)
    return w1, b1, w2, b2


if __name__ == "__main__":
    key = jax.random.PRNGKey(0)
    kx, kp, kx2 = jax.random.split(key, 3)

    # Small shapes consistent with the module: batch=2, seq=8, embed=32, hidden=64.
    B, S, E, H = 2, 8, 32, 64
    x = jax.random.normal(kx, (B, S, E), jnp.float32)
    w1, b1, w2, b2 = _init_params(kp, E, H)
    params = prepare_vol_head_params(w1, b1, w2, b2)          # exact f32 path

    out = jax.block_until_ready(vol_surface_head(x, params))
    ref = _reference(x, w1, b1, w2, b2)
    assert out.shape == (B, S)
    assert jnp.allclose(out, ref, atol=1e-5, rtol=1e-5), (
        f"max abs err {jnp.max(jnp.abs(out - ref))}")

    # Multi-tile + ragged tail (M = 1200, not a multiple of the tile) handled
    # by the cdiv grid without any host-side padding copy.
    B2, S2 = 4, 300
    x2 = jax.random.normal(kx2, (B2, S2, E), jnp.float32)
    out2 = jax.block_until_ready(vol_surface_head(x2, params))
    ref2 = _reference(x2, w1, b1, w2, b2)
    assert out2.shape == (B2, S2)
    assert jnp.allclose(out2, ref2, atol=1e-5, rtol=1e-5), (
        f"max abs err {jnp.max(jnp.abs(out2 - ref2))}")

    # Optional bandwidth-optimized bf16 MXU path (relaxed tolerance).
    params_bf16 = prepare_vol_head_params(w1, b1, w2, b2, compute_dtype=jnp.bfloat16)
    out3 = jax.block_until_ready(vol_surface_head(x2, params_bf16))
    assert out3.shape == (B2, S2)
    assert jnp.allclose(out3, ref2, atol=5e-2, rtol=5e-2), (
        f"bf16 max abs err {jnp.max(jnp.abs(out3 - ref2))}")

    print("KERNEL_OK")
</pallas_src>

<mosaic_0001>
module attributes {stable_mosaic.version = 11 : i64} {
  func.func @_vol_head_kernel(%arg0: i32, %arg1: memref<16x32xf32, #tpu.memory_space<vmem>>, %arg2: memref<64x32xf32, #tpu.memory_space<vmem>>, %arg3: memref<64x1xf32, #tpu.memory_space<vmem>>, %arg4: memref<1x64xf32, #tpu.memory_space<vmem>>, %arg5: memref<1xf32, #tpu.memory_space<smem>>, %arg6: memref<1x1x16xf32, #tpu.memory_space<vmem>>) attributes {dimension_semantics = [#tpu.dimension_semantics<parallel>], iteration_bounds = array<i64: 1>, scalar_prefetch = 0 : i64, scratch_operands = 0 : i64, tpu.core_type = #tpu.core_type<tc>, window_params = [{transform_indices = @transform_0, window_bounds = array<i64: 16, 32>}, {pipeline_mode = #tpu.pipeline_mode<synchronous>, transform_indices = @transform_1, window_bounds = array<i64: 64, 32>}, {pipeline_mode = #tpu.pipeline_mode<synchronous>, transform_indices = @transform_2, window_bounds = array<i64: 64, 1>}, {pipeline_mode = #tpu.pipeline_mode<synchronous>, transform_indices = @transform_3, window_bounds = array<i64: 1, 64>}, {transform_indices = @transform_4, window_bounds = array<i64: 1>}, {transform_indices = @transform_5, window_bounds = array<i64: 1, 1, 16>}]} {
    %c0 = arith.constant 0 : index
    %c0_0 = arith.constant 0 : index
    %0 = vector.load %arg1[%c0, %c0_0] : memref<16x32xf32, #tpu.memory_space<vmem>>, vector<16x32xf32>
    %c0_1 = arith.constant 0 : index
    %c0_2 = arith.constant 0 : index
    %1 = vector.load %arg2[%c0_1, %c0_2] : memref<64x32xf32, #tpu.memory_space<vmem>>, vector<64x32xf32>
    "tpu.trace_start"() <{level = 10 : i32, message = "he,me->hm"}> : () -> ()
    %cst = arith.constant dense<0.000000e+00> : vector<64x16xf32>
    %2 = tpu.matmul %1, %0, %cst {dimension_numbers = #tpu.dot_dimension_numbers<[1], [1], [0], [0], [0, 0, 1, 0], [], []>} : vector<64x32xf32>, vector<16x32xf32>, vector<64x16xf32> -> vector<64x16xf32>
    "tpu.trace_stop"() : () -> ()
    %c0_3 = arith.constant 0 : index
    %c0_4 = arith.constant 0 : index
    %3 = vector.load %arg3[%c0_3, %c0_4] : memref<64x1xf32, #tpu.memory_space<vmem>>, vector<64x1xf32>
    %4 = vector.broadcast %3 : vector<64x1xf32> to vector<64x16xf32>
    %5 = arith.addf %2, %4 : vector<64x16xf32>
    %cst_5 = arith.constant 0.707106769 : f32
    %6 = vector.broadcast %cst_5 : f32 to vector<64x16xf32>
    %7 = arith.mulf %5, %6 : vector<64x16xf32>
    %8 = math.erf %7 : vector<64x16xf32>
    %cst_6 = arith.constant 1.000000e+00 : f32
    %9 = vector.broadcast %cst_6 : f32 to vector<64x16xf32>
    %10 = arith.addf %9, %8 : vector<64x16xf32>
    %11 = arith.mulf %5, %10 : vector<64x16xf32>
    %c0_7 = arith.constant 0 : index
    %c0_8 = arith.constant 0 : index
    %12 = vector.load %arg4[%c0_7, %c0_8] : memref<1x64xf32, #tpu.memory_space<vmem>>, vector<1x64xf32>
    %cst_9 = arith.constant dense<0.000000e+00> : vector<1x16xf32>
    %13 = tpu.matmul %12, %11, %cst_9 {dimension_numbers = #tpu.dot_dimension_numbers<[1], [0], [0], [1], [0, 0, 1, 1], [], []>} : vector<1x64xf32>, vector<64x16xf32>, vector<1x16xf32> -> vector<1x16xf32>
    %c0_10 = arith.constant 0 : index
    %14 = memref.load %arg5[%c0_10] : memref<1xf32, #tpu.memory_space<smem>>
    %15 = vector.broadcast %14 : f32 to vector<1x16xf32>
    %16 = arith.addf %13, %15 : vector<1x16xf32>
    %cst_11 = arith.constant 2.000000e+01 : f32
    %17 = vector.broadcast %cst_11 : f32 to vector<1x16xf32>
    %18 = arith.cmpf ogt, %16, %17 : vector<1x16xf32>
    %cst_12 = arith.constant 2.000000e+01 : f32
    %19 = vector.broadcast %cst_12 : f32 to vector<1x16xf32>
    %20 = arith.minimumf %16, %19 : vector<1x16xf32>
    %21 = math.exp %20 : vector<1x16xf32>
    %22 = math.log1p %21 : vector<1x16xf32>
    %23 = arith.select %18, %16, %22 : vector<1x16xi1>, vector<1x16xf32>
    %c0_13 = arith.constant 0 : index
    %c0_14 = arith.constant 0 : index
    %c0_15 = arith.constant 0 : index
    %24 = vector.load %arg6[%c0_13, %c0_14, %c0_15] : memref<1x1x16xf32, #tpu.memory_space<vmem>>, vector<1x1x16xf32>
    %25 = vector.shape_cast %24 : vector<1x1x16xf32> to vector<1x16xf32>
    %26 = vector.shape_cast %23 : vector<1x16xf32> to vector<1x1x16xf32>
    tpu.vector_store %arg6[%c0_13, %c0_14, %c0_15], %26 {strides = array<i32>} : memref<1x1x16xf32, #tpu.memory_space<vmem>>, vector<1x1x16xf32>,
    return
  }
  func.func @transform_0(%arg0: i32) -> (i32, i32) {
    %c0_i32 = arith.constant 0 : i32
    %c0_i32_0 = arith.constant 0 : i32
    return %arg0, %c0_i32 : i32, i32
  }
  func.func @transform_1(%arg0: i32) -> (i32, i32) {
    %c0_i32 = arith.constant 0 : i32
    %c0_i32_0 = arith.constant 0 : i32
    %c0_i32_1 = arith.constant 0 : i32
    return %c0_i32, %c0_i32_0 : i32, i32
  }
  func.func @transform_2(%arg0: i32) -> (i32, i32) {
    %c0_i32 = arith.constant 0 : i32
    %c0_i32_0 = arith.constant 0 : i32
    %c0_i32_1 = arith.constant 0 : i32
    return %c0_i32, %c0_i32_0 : i32, i32
  }
  func.func @transform_3(%arg0: i32) -> (i32, i32) {
    %c0_i32 = arith.constant 0 : i32
    %c0_i32_0 = arith.constant 0 : i32
    %c0_i32_1 = arith.constant 0 : i32
    return %c0_i32, %c0_i32_0 : i32, i32
  }
  func.func @transform_4(%arg0: i32) -> i32 {
    %c0_i32 = arith.constant 0 : i32
    %c0_i32_0 = arith.constant 0 : i32
    return %c0_i32 : i32
  }
  func.func @transform_5(%arg0: i32) -> (i32, i32, i32) {
    %c0_i32 = arith.constant 0 : i32
    %c0_i32_0 = arith.constant 0 : i32
    %c0_i32_1 = arith.constant 0 : i32
    return %arg0, %c0_i32, %c0_i32_0 : i32, i32, i32
  }
}

</mosaic_0001>

<llo_original>
// kernel: tpu_custom_call.1
$region0: #{tpu_custom_call.1}
  #allocation0 [shape = 'u32[]', space=smem, size = 0x4, offset = 0x4, fixed_abs, tag = 'smem constant byte address 0x4 - core index']
  #allocation1 [shape = 'u32[144,128]{1,0:T(1,128)}', space=vmem, size = 0x12000, scoped, tag = 'internal scratch']
  #allocation2 [shape = 'f32[1]{0:T(128)S(6)}', space=smem, size = 0x200, scoped, tag = 'scoped memory for tpu_custom_call.1']
  %s0 = inlined_call_operand.vmem [shape: f32[16,32], index: 0, kind: input, shape index: {}]
  %s1 = inlined_call_operand.vmem [shape: f32[64,32], index: 1, kind: input, shape index: {}]
  %s2 = inlined_call_operand.vmem [shape: f32[64,1], index: 2, kind: input, shape index: {}]
  %s3 = inlined_call_operand.vmem [shape: f32[1,64], index: 3, kind: input, shape index: {}]
  %s4 = inlined_call_operand.<no memory space> [shape: f32[1], index: 4, kind: input, shape index: {}]
  %s5 = inlined_call_operand.hbm [shape: f32[1,1,16], index: 5, kind: output, shape index: {}]
  %s6 = sld [smem:[#allocation0]]
  $region30: #{tpu_custom_call.1} parent=0
    _
  %s8 = ssub.s32 1, %s6
  %s9 = scalar_select 0, %s8, %s6
  %10 = sst [smem:[#allocation2]] %s4
  $region1: #{tpu_custom_call.1} parent=0
    #allocation3 [shape = 'u8[512]{0}', space=vmem, size = 0x400, scoped, tag = 'output window, operand 0, single buffered']
    #allocation4 [shape = 's32[1]{0}', space=sflag, size = 0x4, scoped, tag = 'scoped memory for tpu_custom_call.1']
    %11 = vsyncpa [#allocation4], 0
    // Predicated region
    $region2: #{tpu_custom_call.1} parent=1 // pred_check
      _
    $region3: #{tpu_custom_call.1} parent=1 // pred_check_branch
      %13 = sbr.rel (0) target = $region5
    $region4: #{tpu_custom_call.1} parent=1 // pred_region
      _
    $region5: #{tpu_custom_call.1} parent=1 // pred_fallthru
      _
    // Predicated region
    $region6: #{tpu_custom_call.1} parent=1 // pred_check
      _
    $region7: #{tpu_custom_call.1} parent=1 // pred_check_branch
      %15 = sbr.rel (0) target = $region9
    $region8: #{tpu_custom_call.1} parent=1 // pred_region
      _
    $region9: #{tpu_custom_call.1} parent=1 // pred_fallthru
      _
    // Predicated region
    $region10: #{tpu_custom_call.1} parent=1 // pred_check
      _
    $region11: #{tpu_custom_call.1} parent=1 // pred_check_branch
      %17 = sbr.rel (0) target = $region13
    $region12: #{tpu_custom_call.1} parent=1 // pred_region
      _
    $region13: #{tpu_custom_call.1} parent=1 // pred_fallthru
      _
    // Predicated region
    $region14: #{tpu_custom_call.1} parent=1 // pred_check
      _
    $region15: #{tpu_custom_call.1} parent=1 // pred_check_branch
      %19 = sbr.rel (0) target = $region17
    $region16: #{tpu_custom_call.1} parent=1 // pred_region
      _
    $region17: #{tpu_custom_call.1} parent=1 // pred_fallthru
      _
    // Predicated region
    $region18: #{tpu_custom_call.1} parent=1 // pred_check
      _
    $region19: #{tpu_custom_call.1} parent=1 // pred_check_branch
      %21 = sbr.rel (0) target = $region21
    $region20: #{tpu_custom_call.1} parent=1 // pred_region
      _
    $region21: #{tpu_custom_call.1} parent=1 // pred_fallthru
      _
    %v22 = vld [vmem:[%s0] sm:$0xff]
    %v23 = vld [vmem:[%s0 + $0x8] sm:$0xff]
    %v24 = vld [vmem:[%s1] sm:$0xff]
    %v25 = vld [vmem:[%s1 + $0x8] sm:$0xff]
    %v26 = vld [vmem:[%s1 + $0x10] sm:$0xff]
    %v27 = vld [vmem:[%s1 + $0x18] sm:$0xff]
    %v28 = vld [vmem:[%s1 + $0x20] sm:$0xff]
    %v29 = vld [vmem:[%s1 + $0x28] sm:$0xff]
    %v30 = vld [vmem:[%s1 + $0x30] sm:$0xff]
    %v31 = vld [vmem:[%s1 + $0x38] sm:$0xff]
    %v32 = vld [vmem:[%s2] sm:$0xff]
    %v33 = vld [vmem:[%s2 + $0x8] sm:$0xff]
    %v34 = vld [vmem:[%s2 + $0x10] sm:$0xff]
    %v35 = vld [vmem:[%s2 + $0x18] sm:$0xff]
    %v36 = vld [vmem:[%s2 + $0x20] sm:$0xff]
    %v37 = vld [vmem:[%s2 + $0x28] sm:$0xff]
    %v38 = vld [vmem:[%s2 + $0x30] sm:$0xff]
    %v39 = vld [vmem:[%s2 + $0x38] sm:$0xff]
    %41 = vset.pattern.permute.xlu0 0
    %42 = vperm.xlu0 %41, %v32
    %v43 = vpop.permute.xlu0 %42
    %46 = vset.pattern.permute.xlu0 0
    %47 = vperm.xlu0 %46, %v33
    %v48 = vpop.permute.xlu0 %47
    %51 = vset.pattern.permute.xlu0 0
    %52 = vperm.xlu0 %51, %v34
    %v53 = vpop.permute.xlu0 %52
    %56 = vset.pattern.permute.xlu0 0
    %57 = vperm.xlu0 %56, %v35
    %v58 = vpop.permute.xlu0 %57
    %61 = vset.pattern.permute.xlu0 0
    %62 = vperm.xlu0 %61, %v36
    %v63 = vpop.permute.xlu0 %62
    %66 = vset.pattern.permute.xlu0 0
    %67 = vperm.xlu0 %66, %v37
    %v68 = vpop.permute.xlu0 %67
    %71 = vset.pattern.permute.xlu0 0
    %72 = vperm.xlu0 %71, %v38
    %v73 = vpop.permute.xlu0 %72
    %76 = vset.pattern.permute.xlu0 0
    %77 = vperm.xlu0 %76, %v39
    %v78 = vpop.permute.xlu0 %77
    %vm80 = vcmask 261120
    %v82 = vsel %vm80, %v24, 0
    %v85 = vsel %vm80, %v25, 0
    %v88 = vsel %vm80, %v26, 0
    %v91 = vsel %vm80, %v27, 0
    %v94 = vsel %vm80, %v28, 0
    %v97 = vsel %vm80, %v29, 0
    %v100 = vsel %vm80, %v30, 0
    %v103 = vsel %vm80, %v31, 0
    %v106 = vsel %vm80, %v22, 0
    %v109 = vsel %vm80, %v23, 0
    %111 = vmatprep.subr.mxu0 0.0
    %112 = vmatpush1.xpose.msra.mxu0 0.0
    %113 = vmatprep.subr.mxu0 0.0
    %114 = vmatpush1.xpose.msra.mxu0 0.0
    %115 = vmatprep.subr.mxu0 0.0
    %116 = vmatpush1.xpose.msra.mxu0 0.0
    %117 = vmatprep.subr.mxu0 0.0
    %118 = vmatpush1.xpose.msra.mxu0 0.0
    %119 = vmatprep.subr.mxu0 0.0
    %120 = vmatpush1.xpose.msra.mxu0 0.0
    %121 = vmatprep.subr.mxu0 0.0
    %122 = vmatpush1.xpose.msra.mxu0 0.0
    %123 = vmatprep.subr.mxu0 0.0
    %124 = vmatpush1.xpose.msra.mxu0 0.0
    %125 = vmatprep.subr.mxu0 0.0
    %126 = vmatpush1.xpose.msra.mxu0 0.0
    %127 = vmatprep.subr.mxu0 0.0
    %128 = vmatpush1.xpose.msra.mxu0 0.0
    %129 = vmatprep.subr.mxu0 0.0
    %130 = vmatpush1.xpose.msra.mxu0 0.0
    %131 = vmatprep.subr.mxu0 0.0
    %132 = vmatpush1.xpose.msra.mxu0 0.0
    %133 = vmatprep.subr.mxu0 0.0
    %134 = vmatpush1.xpose.msra.mxu0 0.0
    %135 = vmatprep.subr.mxu0 0.0
    %136 = vmatpush1.xpose.msra.mxu0 0.0
    %137 = vmatprep.subr.mxu0 0.0
    %138 = vmatpush1.xpose.msra.mxu0 0.0
    %139 = vmatprep.subr.mxu0 0.0
    %140 = vmatpush1.xpose.msra.mxu0 %v109
    %141 = vmatprep.subr.mxu0 0.0
    %142 = vmatpush1.xpose.msra.mxu0 %v106
    %143 = vmatprep.subr.mxu0 0.0
    %144 = vmatpush2.xpose.msra.mxu0 0.0
    %145 = vmatprep.subr.mxu0 0.0
    %146 = vmatpush2.xpose.msra.mxu0 0.0
    %147 = vmatprep.subr.mxu0 0.0
    %148 = vmatpush2.xpose.msra.mxu0 0.0
    %149 = vmatprep.subr.mxu0 0.0
    %150 = vmatpush2.xpose.msra.mxu0 0.0
    %151 = vmatprep.subr.mxu0 0.0
    %152 = vmatpush2.xpose.msra.mxu0 0.0
    %153 = vmatprep.subr.mxu0 0.0
    %154 = vmatpush2.xpose.msra.mxu0 0.0
    %155 = vmatprep.subr.mxu0 0.0
    %156 = vmatpush2.xpose.msra.mxu0 0.0
    %157 = vmatprep.subr.mxu0 0.0
    %158 = vmatpush2.xpose.msra.mxu0 0.0
    %159 = vmatprep.subr.mxu0 0.0
    %160 = vmatpush2.xpose.msra.mxu0 0.0
    %161 = vmatprep.subr.mxu0 0.0
    %162 = vmatpush2.xpose.msra.mxu0 0.0
    %163 = vmatprep.subr.mxu0 0.0
    %164 = vmatpush2.xpose.msra.mxu0 0.0
    %165 = vmatprep.subr.mxu0 0.0
    %166 = vmatpush2.xpose.msra.mxu0 0.0
    %167 = vmatprep.subr.mxu0 0.0
    %168 = vmatpush2.xpose.msra.mxu0 0.0
    %169 = vmatprep.subr.mxu0 0.0
    %170 = vmatpush2.xpose.msra.mxu0 0.0
    %171 = vmatprep.subr.mxu0 0.0
    %172 = vmatpush2.xpose.msra.mxu0 0.0
    %173 = vmatprep.subr.mxu0 0.0
    %174 = vmatpush2.xpose.msra.mxu0 0.0
    %175 = vmatprep.mubr.f32.mxu0 0.0
    %176 = vmatmul.mubr.f32.gmra.mxu0 %v82
    %v177 = vpop.f32.mrf.mxu0
    %v178 = vadd.f32 %v43, %v177
    %v179 = vpop.f32.mrf.mxu0
    %180 = vmatprep.mubr.f32.mxu0 0.0
    %181 = vmatmul.mubr.f32.gmra.mxu0 %v85
    %v182 = vpop.f32.mrf.mxu0
    %v183 = vadd.f32 %v48, %v182
    %v184 = vpop.f32.mrf.mxu0
    %185 = vmatprep.mubr.f32.mxu0 0.0
    %186 = vmatmul.mubr.f32.gmra.mxu0 %v88
    %v187 = vpop.f32.mrf.mxu0
    %v188 = vadd.f32 %v53, %v187
    %v189 = vpop.f32.mrf.mxu0
    %190 = vmatprep.mubr.f32.mxu0 0.0
    %191 = vmatmul.mubr.f32.gmra.mxu0 %v91
    %v192 = vpop.f32.mrf.mxu0
    %v193 = vadd.f32 %v58, %v192
    %v194 = vpop.f32.mrf.mxu0
    %195 = vmatprep.mubr.f32.mxu0 0.0
    %196 = vmatmul.mubr.f32.gmra.mxu0 %v94
    %v197 = vpop.f32.mrf.mxu0
    %v198 = vadd.f32 %v63, %v197
    %v199 = vpop.f32.mrf.mxu0
    %200 = vmatprep.mubr.f32.mxu0 0.0
    %201 = vmatmul.mubr.f32.gmra.mxu0 %v97
    %v202 = vpop.f32.mrf.mxu0
    %v203 = vadd.f32 %v68, %v202
    %v204 = vpop.f32.mrf.mxu0
    %205 = vmatprep.mubr.f32.mxu0 0.0
    %206 = vmatmul.mubr.f32.gmra.mxu0 %v100
    %v207 = vpop.f32.mrf.mxu0
    %v208 = vadd.f32 %v73, %v207
    %v209 = vpop.f32.mrf.mxu0
    %210 = vmatprep.mubr.f32.mxu0 0.0
    %211 = vmatmul.mubr.f32.gmra.mxu0 %v103
    %v212 = vpop.f32.mrf.mxu0
    %v213 = vadd.f32 %v78, %v212
    %v214 = vpop.f32.mrf.mxu0
    %215 = vdwg.mxu0
    %v216 = vmul.f32 %v178, 0.70710677
    %v217 = vmul.f32 %v183, 0.70710677
    %v218 = vmul.f32 %v188, 0.70710677
    %v219 = vmul.f32 %v193, 0.70710677
    %v220 = vmul.f32 %v198, 0.70710677
    %v221 = vmul.f32 %v203, 0.70710677
    %v222 = vmul.f32 %v208, 0.70710677
    %v223 = vmul.f32 %v213, 0.70710677
    %v224 = verf.f32.pop %v216
    %v225 = verf.f32.pop %v217
    %v226 = verf.f32.pop %v218
    %v227 = verf.f32.pop %v219
    %v228 = verf.f32.pop %v220
    %v229 = verf.f32.pop %v221
    %v230 = verf.f32.pop %v222
    %v231 = verf.f32.pop %v223
    %v232 = vadd.f32 %v224, 1.0
    %v233 = vadd.f32 %v225, 1.0
    %v234 = vadd.f32 %v226, 1.0
    %v235 = vadd.f32 %v227, 1.0
    %v236 = vadd.f32 %v228, 1.0
    %v237 = vadd.f32 %v229, 1.0
    %v238 = vadd.f32 %v230, 1.0
    %v239 = vadd.f32 %v231, 1.0
    %v240 = vmul.f32 %v178, %v232
    %v241 = vmul.f32 %v183, %v233
    %v242 = vmul.f32 %v188, %v234
    %v243 = vmul.f32 %v193, %v235
    %v244 = vmul.f32 %v198, %v236
    %v245 = vmul.f32 %v203, %v237
    %v246 = vmul.f32 %v208, %v238
    %v247 = vmul.f32 %v213, %v239
    %v248 = vld [vmem:[%s3] sm:$0x1]
    %s249 = sld [smem:[#allocation2]]
    %v250 = vstv %s249
    %vm251 = vcmask 523264
    %v253 = vsel %vm251, %v248, 0
    %255 = vmatprep.subr.mxu0 0.0
    %256 = vmatpush1.msra.mxu0 0.0
    %257 = vmatprep.subr.mxu0 0.0
    %258 = vmatpush1.msra.mxu0 0.0
    %259 = vmatprep.subr.mxu0 0.0
    %260 = vmatpush1.msra.mxu0 0.0
    %261 = vmatprep.subr.mxu0 0.0
    %262 = vmatpush1.msra.mxu0 0.0
    %263 = vmatprep.subr.mxu0 0.0
    %264 = vmatpush1.msra.mxu0 0.0
    %265 = vmatprep.subr.mxu0 0.0
    %266 = vmatpush1.msra.mxu0 0.0
    %267 = vmatprep.subr.mxu0 0.0
    %268 = vmatpush1.msra.mxu0 0.0
    %269 = vmatprep.subr.mxu0 0.0
    %270 = vmatpush1.msra.mxu0 0.0
    %271 = vmatprep.subr.mxu0 0.0
    %272 = vmatpush1.msra.mxu0 %v247
    %273 = vmatprep.subr.mxu0 0.0
    %274 = vmatpush1.msra.mxu0 %v246
    %275 = vmatprep.subr.mxu0 0.0
    %276 = vmatpush1.msra.mxu0 %v245
    %277 = vmatprep.subr.mxu0 0.0
    %278 = vmatpush1.msra.mxu0 %v244
    %279 = vmatprep.subr.mxu0 0.0
    %280 = vmatpush1.msra.mxu0 %v243
    %281 = vmatprep.subr.mxu0 0.0
    %282 = vmatpush1.msra.mxu0 %v242
    %283 = vmatprep.subr.mxu0 0.0
    %284 = vmatpush1.msra.mxu0 %v241
    %285 = vmatprep.subr.mxu0 0.0
    %286 = vmatpush1.msra.mxu0 %v240
    %287 = vmatprep.subr.mxu0 0.0
    %288 = vmatpush2.msra.mxu0 0.0
    %289 = vmatprep.subr.mxu0 0.0
    %290 = vmatpush2.msra.mxu0 0.0
    %291 = vmatprep.subr.mxu0 0.0
    %292 = vmatpush2.msra.mxu0 0.0
    %293 = vmatprep.subr.mxu0 0.0
    %294 = vmatpush2.msra.mxu0 0.0
    %295 = vmatprep.subr.mxu0 0.0
    %296 = vmatpush2.msra.mxu0 0.0
    %297 = vmatprep.subr.mxu0 0.0
    %298 = vmatpush2.msra.mxu0 0.0
    %299 = vmatprep.subr.mxu0 0.0
    %300 = vmatpush2.msra.mxu0 0.0
    %301 = vmatprep.subr.mxu0 0.0
    %302 = vmatpush2.msra.mxu0 0.0
    %303 = vmatprep.subr.mxu0 0.0
    %304 = vmatpush2.msra.mxu0 0.0
    %305 = vmatprep.subr.mxu0 0.0
    %306 = vmatpush2.msra.mxu0 0.0
    %307 = vmatprep.subr.mxu0 0.0
    %308 = vmatpush2.msra.mxu0 0.0
    %309 = vmatprep.subr.mxu0 0.0
    %310 = vmatpush2.msra.mxu0 0.0
    %311 = vmatprep.subr.mxu0 0.0
    %312 = vmatpush2.msra.mxu0 0.0
    %313 = vmatprep.subr.mxu0 0.0
    %314 = vmatpush2.msra.mxu0 0.0
    %315 = vmatprep.subr.mxu0 0.0
    %316 = vmatpush2.msra.mxu0 0.0
    %317 = vmatprep.subr.mxu0 0.0
    %318 = vmatpush2.msra.mxu0 0.0
    %319 = vmatprep.mubr.f32.mxu0 0.0
    %320 = vmatmul.mubr.f32.gmra.mxu0 %v253
    %v321 = vpop.f32.mrf.mxu0
    %v322 = vadd.f32 %v250, %v321
    %v323 = vpop.f32.mrf.mxu0
    %324 = vdwg.mxu0
    %vm325 = vcmp.gt.f32.partialorder %v322, 20.0
    %v326 = vmin.f32 %v322, 20.0
    %v327 = vmul.f32 %v326, 1.442695
    %v328 = vpow.pop %v327
    %v329 = vadd.f32 %v328, 1.0
    %v330 = vlog2.pop %v329
    %v331 = vmul.f32 %v330, 0.6931472
    %v332 = vmul.f32 -0.5, %v328
    %v333 = vadd.f32 %v332, 1.0
    %v334 = vmul.f32 %v333, %v328
    %v335 = vand.u32 2147483647, %v328
    %vm336 = vcmp.lt.f32.partialorder %v335, 0.0004427343
    %v337 = vsel %vm336, %v334, %v331
    %v338 = vsel %vm325, %v322, %v337
    %vm339 = vcmask 122880
    %340 = vst.msk [vmem:[#allocation3] sm:$0x1] %vm339, %v338
    // Predicated region
    $region22: #{tpu_custom_call.1} parent=1 // pred_check
      _
    $region23: #{tpu_custom_call.1} parent=1 // pred_check_branch
      %342 = sbr.rel (0) target = $region25
    $region24: #{tpu_custom_call.1} parent=1 // pred_region
      %s344 = ssub.s32 16, 16
      %345 = vsyncadd [#allocation4], %s344
      %s347 = sshll.u32 [#allocation3], 4
      %s348 = int_to_ptr.vmem [resolvable:$true] %s347
      %350 = dma.vmem_to_hbm [thread:$0]  %s348, 16, %s5, [#allocation4]
    $region25: #{tpu_custom_call.1} parent=1 // pred_fallthru
      _
    // Predicated region
    $region26: #{tpu_custom_call.1} parent=1 // pred_check
      _
    $region27: #{tpu_custom_call.1} parent=1 // pred_check_branch
      %352 = sbr.rel (0) target = $region29
    $region28: #{tpu_custom_call.1} parent=1 // pred_region
      %353 = dma.done [#allocation4], 16
    $region29: #{tpu_custom_call.1} parent=1 // pred_fallthru
      _
    %354 = vsyncpa [#allocation4], 1

</llo_original>
